<compile_context>
chip_gen: v6e
topology: v6e:2x2x1
jax: 0.10.0
libtpu: 0.0.40
codegen_flags: <defaults>
</compile_context>

<pallas_src>
import functools

import jax
import jax.numpy as jnp
from jax.experimental import pallas as pl
from jax.experimental.pallas import tpu as pltpu


def _attention_kernel(scale, lens_ref, q_ref, k_ref, v_ref, ctx_ref, attn_ref):
    """One block of TB batch rows per grid step (time-major key/value blocks).

    lens_ref : VMEM (1, TB, 1) int32   mask lengths
    q_ref    : VMEM (TB, K)            decoder query rows
    k_ref    : VMEM (T, TB, K)         encoder keys   (time-major, as in HBM)
    v_ref    : VMEM (T, TB, V)         encoder values (time-major, as in HBM)
    ctx_ref  : VMEM (TB, V)            attended context
    attn_ref : VMEM (TB, T)            attention weights
    """
    t_len, tb, k_dim = k_ref.shape
    v_dim = v_ref.shape[2]

    # Fold the 1/sqrt(K) scale into q (K elements) instead of the T-wide scores.
    q = q_ref[...] * jnp.float32(scale)                       # (TB, K)

    # scores[t, b] = sum_k key[t, b, k] * q[b, k], broadcast along the V lane dim
    # via an MXU matmul with a ones matrix -> (T, TB, V) with all lanes equal.
    prod = k_ref[...] * q[None, :, :]                         # (T, TB, K)
    ones_kv = jnp.ones((k_dim, v_dim), jnp.float32)
    scores_v = jnp.dot(prod.reshape(t_len * tb, k_dim), ones_kv,
                       preferred_element_type=jnp.float32)
    scores_v = scores_v.reshape(t_len, tb, v_dim)             # (T, TB, V)

    # Length mask: position t >= mask_lengths[b] -> -1e9 (matches masked_fill_).
    pos = jax.lax.broadcasted_iota(jnp.int32, (t_len, tb, v_dim), 0)
    scores_v = jnp.where(pos >= lens_ref[...], jnp.float32(-1.0e9), scores_v)

    # Softmax over T (the leading axis -> lanes stay aligned, no relayouts).
    m = jnp.max(scores_v, axis=0, keepdims=True)              # (1, TB, V)
    e = jnp.exp(scores_v - m)                                 # (T, TB, V)
    denom = jnp.sum(e, axis=0, keepdims=True)                 # (1, TB, V)
    recip = pl.reciprocal(denom, approx=True)                 # EUP slot
    recip = recip * (2.0 - denom * recip)                     # Newton step: f32 accurate
    attn_v = e * recip                                        # (T, TB, V)

    # context[b, v] = sum_t attn[t, b] * value[t, b, v]   (VPU mul + leading-axis sum)
    ctx_ref[...] = jnp.sum(attn_v * v_ref[...], axis=0).astype(ctx_ref.dtype)

    # Attention output in (batch, T) layout: lane-reduce (all lanes equal), then
    # "transpose" with an identity nt-matmul on the otherwise idle MXU.
    attn_tb = jnp.max(attn_v, axis=-1)                        # (T, TB)
    eye_tb = jnp.eye(tb, dtype=jnp.float32)                   # (TB, TB)
    attn_bt = jax.lax.dot_general(
        eye_tb, attn_tb,
        dimension_numbers=(((1,), (1,)), ((), ())),
        preferred_element_type=jnp.float32)                   # (TB, T)
    attn_ref[...] = attn_bt.astype(attn_ref.dtype)


def _choose_batch_block(n, t_len, k_dim, v_dim, budget_bytes=24 * 1024 * 1024):
    """Pick the batch tile TB (multiple of 8) and the padded batch size."""
    n8 = ((n + 7) // 8) * 8
    # Rough per-batch-row VMEM bytes: double-buffered key/value blocks plus the
    # (T, TB, K/V) intermediates of the broadcast softmax.
    per_row = 4 * t_len * (3 * k_dim + 6 * v_dim + 2) + 4 * (k_dim + 2 * v_dim + 4 * t_len)
    cap = max(8, (budget_bytes // max(per_row, 1)) // 8 * 8)
    if n8 <= cap and n8 <= 512:
        return n8, n8                     # single block covering all rows
    tb = max(8, min(cap, 256))
    n_pad = ((n + tb - 1) // tb) * tb
    return tb, n_pad


def attention_forward(query, key, value, mask_lengths, mode="scaled_dot"):
    """Pallas equivalent of Attention.forward.

    query        : (N, K) float32
    key          : (T, N, K) float32   (time-major, used as-is -- no transpose copy)
    value        : (T, N, V) float32   (time-major, used as-is -- no transpose copy)
    mask_lengths : (N,) int
    returns (context (N, V), attention (N, T))
    """
    if mode not in ("scaled_dot", "dot"):
        raise NotImplementedError("Attention mode not implemented")

    t_len, n, k_dim = key.shape
    v_dim = value.shape[2]
    assert query.shape == (n, k_dim)
    assert value.shape[:2] == (t_len, n)

    scale = float(k_dim) ** (-0.5) if mode == "scaled_dot" else 1.0
    tb, n_pad = _choose_batch_block(n, t_len, k_dim, v_dim)

    query_p = query.astype(jnp.float32)
    key_p = key.astype(jnp.float32)
    value_p = value.astype(jnp.float32)
    lens = mask_lengths.astype(jnp.int32)
    if n_pad != n:
        pad = n_pad - n
        query_p = jnp.pad(query_p, ((0, pad), (0, 0)))
        key_p = jnp.pad(key_p, ((0, 0), (0, pad), (0, 0)))
        value_p = jnp.pad(value_p, ((0, 0), (0, pad), (0, 0)))
        lens = jnp.pad(lens, ((0, pad),))
    lens3 = lens.reshape(1, n_pad, 1)

    grid = (n_pad // tb,)
    kernel = functools.partial(_attention_kernel, scale)

    cost = pl.CostEstimate(
        flops=int(2 * n_pad * t_len * (k_dim * v_dim + v_dim)),
        transcendentals=int(n_pad * t_len * v_dim),
        bytes_accessed=int(4 * (n_pad * t_len * (k_dim + v_dim)
                                + n_pad * (k_dim + v_dim + 2 * t_len + 1))),
    )

    context, attention = pl.pallas_call(
        kernel,
        out_shape=(
            jax.ShapeDtypeStruct((n_pad, v_dim), jnp.float32),
            jax.ShapeDtypeStruct((n_pad, t_len), jnp.float32),
        ),
        grid=grid,
        in_specs=[
            pl.BlockSpec((1, tb, 1), lambda i: (0, i, 0)),             # mask lengths
            pl.BlockSpec((tb, k_dim), lambda i: (i, 0)),               # query
            pl.BlockSpec((t_len, tb, k_dim), lambda i: (0, i, 0)),     # key  (time-major)
            pl.BlockSpec((t_len, tb, v_dim), lambda i: (0, i, 0)),     # value (time-major)
        ],
        out_specs=(
            pl.BlockSpec((tb, v_dim), lambda i: (i, 0)),               # context
            pl.BlockSpec((tb, t_len), lambda i: (i, 0)),               # attention
        ),
        compiler_params=pltpu.CompilerParams(
            dimension_semantics=("parallel",),
            vmem_limit_bytes=48 * 1024 * 1024,
        ),
        cost_estimate=cost,
    )(lens3, query_p, key_p, value_p)

    return context[:n], attention[:n]


def _reference(query, key, value, mask_lengths, mode="scaled_dot"):
    """Pure-JAX reference mirroring the PyTorch code."""
    key_b = jnp.transpose(key, (1, 0, 2))      # (N, T, K)
    value_b = jnp.transpose(value, (1, 0, 2))  # (N, T, V)
    attn = jnp.einsum("ntk,nk->nt", key_b, query,
                      precision=jax.lax.Precision.HIGHEST)
    if mode == "scaled_dot":
        attn = attn * (float(key_b.shape[2]) ** (-0.5))
    t_len = key_b.shape[1]
    mask = jnp.arange(t_len)[None, :] >= mask_lengths[:, None]
    attn = jnp.where(mask, -1.0e9, attn)
    attn = jax.nn.softmax(attn, axis=1)
    context = jnp.einsum("nt,ntv->nv", attn, value_b,
                         precision=jax.lax.Precision.HIGHEST)
    return context, attn


if __name__ == "__main__":
    # small deterministic shapes consistent with the module's forward
    N, T, K, V = 2, 8, 32, 16
    rng = jax.random.PRNGKey(0)
    kq, kk, kv = jax.random.split(rng, 3)

    query = jax.random.normal(kq, (N, K), dtype=jnp.float32)
    key = jax.random.normal(kk, (T, N, K), dtype=jnp.float32)
    value = jax.random.normal(kv, (T, N, V), dtype=jnp.float32)
    mask_lengths = jnp.array([5, 8], dtype=jnp.int32)

    context, attention = attention_forward(query, key, value, mask_lengths)
    jax.block_until_ready((context, attention))

    ref_ctx, ref_attn = _reference(query, key, value, mask_lengths)
    assert context.shape == (N, V) and attention.shape == (N, T)
    assert jnp.allclose(context, ref_ctx, atol=2e-3, rtol=2e-3), \
        float(jnp.max(jnp.abs(context - ref_ctx)))
    assert jnp.allclose(attention, ref_attn, atol=2e-3, rtol=2e-3), \
        float(jnp.max(jnp.abs(attention - ref_attn)))

    print("KERNEL_OK")
</pallas_src>

<mosaic_0001>
module attributes {stable_mosaic.version = 11 : i64} {
  func.func @_attention_kernel(%arg0: i32, %arg1: memref<1x8x1xi32, #tpu.memory_space<vmem>>, %arg2: memref<8x32xf32, #tpu.memory_space<vmem>>, %arg3: memref<8x8x32xf32, #tpu.memory_space<vmem>>, %arg4: memref<8x8x16xf32, #tpu.memory_space<vmem>>, %arg5: memref<8x16xf32, #tpu.memory_space<vmem>>, %arg6: memref<8x8xf32, #tpu.memory_space<vmem>>) attributes {dimension_semantics = [#tpu.dimension_semantics<parallel>], iteration_bounds = array<i64: 1>, scalar_prefetch = 0 : i64, scratch_operands = 0 : i64, tpu.core_type = #tpu.core_type<tc>, window_params = [{transform_indices = @transform_0, window_bounds = array<i64: 1, 8, 1>}, {transform_indices = @transform_1, window_bounds = array<i64: 8, 32>}, {transform_indices = @transform_2, window_bounds = array<i64: 8, 8, 32>}, {transform_indices = @transform_3, window_bounds = array<i64: 8, 8, 16>}, {transform_indices = @transform_4, window_bounds = array<i64: 8, 16>}, {transform_indices = @transform_5, window_bounds = array<i64: 8, 8>}]} {
    %c0 = arith.constant 0 : index
    %c0_0 = arith.constant 0 : index
    %0 = vector.load %arg2[%c0, %c0_0] : memref<8x32xf32, #tpu.memory_space<vmem>>, vector<8x32xf32>
    %cst = arith.constant 0.176776692 : f32
    %1 = vector.broadcast %cst : f32 to vector<8x32xf32>
    %2 = arith.mulf %0, %1 : vector<8x32xf32>
    %c0_1 = arith.constant 0 : index
    %c0_2 = arith.constant 0 : index
    %c0_3 = arith.constant 0 : index
    %3 = vector.load %arg3[%c0_1, %c0_2, %c0_3] : memref<8x8x32xf32, #tpu.memory_space<vmem>>, vector<8x8x32xf32>
    %4 = vector.shape_cast %2 : vector<8x32xf32> to vector<1x8x32xf32>
    %5 = vector.broadcast %4 : vector<1x8x32xf32> to vector<8x8x32xf32>
    %6 = arith.mulf %3, %5 : vector<8x8x32xf32>
    %cst_4 = arith.constant 1.000000e+00 : f32
    %7 = vector.broadcast %cst_4 : f32 to vector<32x16xf32>
    %8 = vector.shape_cast %6 : vector<8x8x32xf32> to vector<64x32xf32>
    %cst_5 = arith.constant dense<0.000000e+00> : vector<64x16xf32>
    %9 = tpu.matmul %8, %7, %cst_5 {dimension_numbers = #tpu.dot_dimension_numbers<[1], [0], [0], [1], [0, 0, 1, 1], [], []>} : vector<64x32xf32>, vector<32x16xf32>, vector<64x16xf32> -> vector<64x16xf32>
    %10 = vector.shape_cast %9 : vector<64x16xf32> to vector<8x8x16xf32>
    %11 = tpu.iota {dimensions = array<i32: 0>} : vector<8x8x16xi32>
    %c0_6 = arith.constant 0 : index
    %c0_7 = arith.constant 0 : index
    %c0_8 = arith.constant 0 : index
    %12 = vector.load %arg1[%c0_6, %c0_7, %c0_8] : memref<1x8x1xi32, #tpu.memory_space<vmem>>, vector<1x8x1xi32>
    %13 = vector.broadcast %12 : vector<1x8x1xi32> to vector<8x8x16xi32>
    %14 = arith.cmpi sge, %11, %13 : vector<8x8x16xi32>
    %cst_9 = arith.constant -1.000000e+09 : f32
    %15 = vector.broadcast %cst_9 : f32 to vector<8x8x16xf32>
    %16 = arith.select %14, %15, %10 : vector<8x8x16xi1>, vector<8x8x16xf32>
    %cst_10 = arith.constant dense<0xFF800000> : vector<8x16xf32>
    %17 = vector.multi_reduction <maximumf>, %16, %cst_10 [0] : vector<8x8x16xf32> to vector<8x16xf32>
    %18 = vector.shape_cast %17 : vector<8x16xf32> to vector<1x8x16xf32>
    %19 = vector.broadcast %18 : vector<1x8x16xf32> to vector<8x8x16xf32>
    %20 = arith.subf %16, %19 : vector<8x8x16xf32>
    %21 = math.exp %20 : vector<8x8x16xf32>
    %cst_11 = arith.constant dense<0.000000e+00> : vector<8x16xf32>
    %22 = vector.multi_reduction <add>, %21, %cst_11 [0] : vector<8x8x16xf32> to vector<8x16xf32>
    %23 = vector.shape_cast %22 : vector<8x16xf32> to vector<1x8x16xf32>
    %24 = tpu.reciprocal %23 {approx = true} : vector<1x8x16xf32> -> vector<1x8x16xf32>
    %25 = arith.mulf %23, %24 : vector<1x8x16xf32>
    %cst_12 = arith.constant 2.000000e+00 : f32
    %26 = vector.broadcast %cst_12 : f32 to vector<1x8x16xf32>
    %27 = arith.subf %26, %25 : vector<1x8x16xf32>
    %28 = arith.mulf %24, %27 : vector<1x8x16xf32>
    %29 = vector.broadcast %28 : vector<1x8x16xf32> to vector<8x8x16xf32>
    %30 = arith.mulf %21, %29 : vector<8x8x16xf32>
    %c0_13 = arith.constant 0 : index
    %c0_14 = arith.constant 0 : index
    %c0_15 = arith.constant 0 : index
    %31 = vector.load %arg4[%c0_13, %c0_14, %c0_15] : memref<8x8x16xf32, #tpu.memory_space<vmem>>, vector<8x8x16xf32>
    %32 = arith.mulf %30, %31 : vector<8x8x16xf32>
    %cst_16 = arith.constant dense<0.000000e+00> : vector<8x16xf32>
    %33 = vector.multi_reduction <add>, %32, %cst_16 [0] : vector<8x8x16xf32> to vector<8x16xf32>
    %c0_17 = arith.constant 0 : index
    %c0_18 = arith.constant 0 : index
    %34 = vector.load %arg5[%c0_17, %c0_18] : memref<8x16xf32, #tpu.memory_space<vmem>>, vector<8x16xf32>
    tpu.vector_store %arg5[%c0_17, %c0_18], %33 {strides = array<i32>} : memref<8x16xf32, #tpu.memory_space<vmem>>, vector<8x16xf32>,
    %cst_19 = arith.constant dense<0xFF800000> : vector<8x8xf32>
    %35 = vector.multi_reduction <maximumf>, %30, %cst_19 [2] : vector<8x8x16xf32> to vector<8x8xf32>
    %36 = tpu.iota {dimensions = array<i32: 0>} : vector<8x8xi32>
    %37 = tpu.iota {dimensions = array<i32: 1>} : vector<8x8xi32>
    %c0_i32 = arith.constant 0 : i32
    %38 = vector.broadcast %c0_i32 : i32 to vector<8x8xi32>
    %39 = arith.addi %36, %38 : vector<8x8xi32>
    %40 = arith.cmpi eq, %39, %37 : vector<8x8xi32>
    %41 = arith.extui %40 : vector<8x8xi1> to vector<8x8xi32>
    %42 = arith.sitofp %41 : vector<8x8xi32> to vector<8x8xf32>
    %cst_20 = arith.constant dense<0.000000e+00> : vector<8x8xf32>
    %43 = tpu.matmul %42, %35, %cst_20 {dimension_numbers = #tpu.dot_dimension_numbers<[1], [1], [0], [0], [0, 0, 1, 0], [], []>} : vector<8x8xf32>, vector<8x8xf32>, vector<8x8xf32> -> vector<8x8xf32>
    %c0_21 = arith.constant 0 : index
    %c0_22 = arith.constant 0 : index
    %44 = vector.load %arg6[%c0_21, %c0_22] : memref<8x8xf32, #tpu.memory_space<vmem>>, vector<8x8xf32>
    tpu.vector_store %arg6[%c0_21, %c0_22], %43 {strides = array<i32>} : memref<8x8xf32, #tpu.memory_space<vmem>>, vector<8x8xf32>,
    return
  }
  func.func @transform_0(%arg0: i32) -> (i32, i32, i32) {
    %c0_i32 = arith.constant 0 : i32
    %c0_i32_0 = arith.constant 0 : i32
    %c0_i32_1 = arith.constant 0 : i32
    return %c0_i32, %arg0, %c0_i32_0 : i32, i32, i32
  }
  func.func @transform_1(%arg0: i32) -> (i32, i32) {
    %c0_i32 = arith.constant 0 : i32
    %c0_i32_0 = arith.constant 0 : i32
    return %arg0, %c0_i32 : i32, i32
  }
  func.func @transform_2(%arg0: i32) -> (i32, i32, i32) {
    %c0_i32 = arith.constant 0 : i32
    %c0_i32_0 = arith.constant 0 : i32
    %c0_i32_1 = arith.constant 0 : i32
    return %c0_i32, %arg0, %c0_i32_0 : i32, i32, i32
  }
  func.func @transform_3(%arg0: i32) -> (i32, i32, i32) {
    %c0_i32 = arith.constant 0 : i32
    %c0_i32_0 = arith.constant 0 : i32
    %c0_i32_1 = arith.constant 0 : i32
    return %c0_i32, %arg0, %c0_i32_0 : i32, i32, i32
  }
  func.func @transform_4(%arg0: i32) -> (i32, i32) {
    %c0_i32 = arith.constant 0 : i32
    %c0_i32_0 = arith.constant 0 : i32
    return %arg0, %c0_i32 : i32, i32
  }
  func.func @transform_5(%arg0: i32) -> (i32, i32) {
    %c0_i32 = arith.constant 0 : i32
    %c0_i32_0 = arith.constant 0 : i32
    return %arg0, %c0_i32 : i32, i32
  }
}

</mosaic_0001>

<llo_original>
// kernel: tpu_custom_call.1
$region0: #{tpu_custom_call.1}
  #allocation0 [shape = 'u32[]', space=smem, size = 0x4, offset = 0x4, fixed_abs, tag = 'smem constant byte address 0x4 - core index']
  #allocation1 [shape = 'u32[144,128]{1,0:T(1,128)}', space=vmem, size = 0x12000, scoped, tag = 'internal scratch']
  %s0 = inlined_call_operand.vmem [shape: s32[1,8,1], index: 0, kind: input, shape index: {}]
  %s1 = inlined_call_operand.vmem [shape: f32[8,32], index: 1, kind: input, shape index: {}]
  %s2 = inlined_call_operand.hbm [shape: f32[8,8,32], index: 2, kind: input, shape index: {}]
  %s3 = inlined_call_operand.hbm [shape: f32[8,8,16], index: 3, kind: input, shape index: {}]
  %s4 = inlined_call_operand.hbm [shape: f32[8,16], index: 4, kind: output, shape index: {0}]
  %s5 = inlined_call_operand.hbm [shape: f32[8,8], index: 5, kind: output, shape index: {1}]
  %6 = xla_tuple %s4, %s5
  %s7 = sld [smem:[#allocation0]]
  $region42: #{tpu_custom_call.1} parent=0
    _
  %s9 = ssub.s32 1, %s7
  %s10 = scalar_select 0, %s9, %s7
  $region1: #{tpu_custom_call.1} parent=0
    #allocation2 [shape = 'u8[32768]{0}', space=vmem, size = 0x8000, scoped, tag = 'input window, operand 2, single buffered']
    #allocation3 [shape = 's32[1]{0}', space=sflag, size = 0x4, scoped, tag = 'scoped memory for tpu_custom_call.1']
    #allocation4 [shape = 's32[1]{0}', space=sflag, size = 0x4, scoped, tag = 'scoped memory for tpu_custom_call.1']
    #allocation5 [shape = 'u8[32768]{0}', space=vmem, size = 0x8000, scoped, tag = 'input window, operand 3, single buffered']
    #allocation6 [shape = 's32[1]{0}', space=sflag, size = 0x4, scoped, tag = 'scoped memory for tpu_custom_call.1']
    #allocation7 [shape = 'u8[4096]{0}', space=vmem, size = 0x1000, scoped, tag = 'output window, operand 0, single buffered']
    #allocation8 [shape = 'u8[4096]{0}', space=vmem, size = 0x1000, scoped, tag = 'output window, operand 1, single buffered']
    #allocation9 [shape = 's32[1]{0}', space=sflag, size = 0x4, scoped, tag = 'scoped memory for tpu_custom_call.1']
    %11 = vsyncpa [#allocation3], 0
    %12 = vsyncpa [#allocation6], 0
    %13 = vsyncpa [#allocation4], 0
    %14 = vsyncpa [#allocation9], 0
    // Predicated region
    $region2: #{tpu_custom_call.1} parent=1 // pred_check
      _
    $region3: #{tpu_custom_call.1} parent=1 // pred_check_branch
      %16 = sbr.rel (0) target = $region5
    $region4: #{tpu_custom_call.1} parent=1 // pred_region
      _
    $region5: #{tpu_custom_call.1} parent=1 // pred_fallthru
      _
    // Predicated region
    $region6: #{tpu_custom_call.1} parent=1 // pred_check
      _
    $region7: #{tpu_custom_call.1} parent=1 // pred_check_branch
      %18 = sbr.rel (0) target = $region9
    $region8: #{tpu_custom_call.1} parent=1 // pred_region
      _
    $region9: #{tpu_custom_call.1} parent=1 // pred_fallthru
      _
    // Predicated region
    $region10: #{tpu_custom_call.1} parent=1 // pred_check
      _
    $region11: #{tpu_custom_call.1} parent=1 // pred_check_branch
      %20 = sbr.rel (0) target = $region13
    $region12: #{tpu_custom_call.1} parent=1 // pred_region
      %s22 = ssub.s32 1024, 1024
      %23 = vsyncadd [#allocation3], %s22
      %s24 = sshll.u32 [#allocation2], 4
      %s25 = int_to_ptr.vmem [resolvable:$true] %s24
      %30 = dma.hbm_to_vmem [thread:$0]  %s2, 1024, %s25, [#allocation3], 128, 128, 8
    $region13: #{tpu_custom_call.1} parent=1 // pred_fallthru
      _
    // Predicated region
    $region14: #{tpu_custom_call.1} parent=1 // pred_check
      _
    $region15: #{tpu_custom_call.1} parent=1 // pred_check_branch
      %32 = sbr.rel (0) target = $region17
    $region16: #{tpu_custom_call.1} parent=1 // pred_region
      %s34 = ssub.s32 1024, 1024
      %35 = vsyncadd [#allocation6], %s34
      %s36 = sshll.u32 [#allocation5], 4
      %s37 = int_to_ptr.vmem [resolvable:$true] %s36
      %42 = dma.hbm_to_vmem [thread:$0]  %s3, 1024, %s37, [#allocation6], 128, 128, 8
    $region17: #{tpu_custom_call.1} parent=1 // pred_fallthru
      _
    // Predicated region
    $region18: #{tpu_custom_call.1} parent=1 // pred_check
      _
    $region19: #{tpu_custom_call.1} parent=1 // pred_check_branch
      %44 = sbr.rel (0) target = $region21
    $region20: #{tpu_custom_call.1} parent=1 // pred_region
      %45 = dma.done [#allocation3], 1024
    $region21: #{tpu_custom_call.1} parent=1 // pred_fallthru
      _
    // Predicated region
    $region22: #{tpu_custom_call.1} parent=1 // pred_check
      _
    $region23: #{tpu_custom_call.1} parent=1 // pred_check_branch
      %47 = sbr.rel (0) target = $region25
    $region24: #{tpu_custom_call.1} parent=1 // pred_region
      %48 = dma.done [#allocation6], 1024
    $region25: #{tpu_custom_call.1} parent=1 // pred_fallthru
      _
    %v49 = vld [vmem:[%s1] sm:$0xff]
    %v50 = vmul.f32 %v49, 0.17677669
    %v51 = vld [vmem:[#allocation2] sm:$0xff]
    %v52 = vld [vmem:[#allocation2 + $0x8] sm:$0xff]
    %v53 = vld [vmem:[#allocation2 + $0x10] sm:$0xff]
    %v54 = vld [vmem:[#allocation2 + $0x18] sm:$0xff]
    %v55 = vld [vmem:[#allocation2 + $0x20] sm:$0xff]
    %v56 = vld [vmem:[#allocation2 + $0x28] sm:$0xff]
    %v57 = vld [vmem:[#allocation2 + $0x30] sm:$0xff]
    %v58 = vld [vmem:[#allocation2 + $0x38] sm:$0xff]
    %v59 = vmul.f32 %v51, %v50
    %v60 = vmul.f32 %v52, %v50
    %v61 = vmul.f32 %v53, %v50
    %v62 = vmul.f32 %v54, %v50
    %v63 = vmul.f32 %v55, %v50
    %v64 = vmul.f32 %v56, %v50
    %v65 = vmul.f32 %v57, %v50
    %v66 = vmul.f32 %v58, %v50
    %vm67 = vcmask 261120
    %v69 = vsel %vm67, %v59, 0
    %v72 = vsel %vm67, %v60, 0
    %v75 = vsel %vm67, %v61, 0
    %v78 = vsel %vm67, %v62, 0
    %v81 = vsel %vm67, %v63, 0
    %v84 = vsel %vm67, %v64, 0
    %v87 = vsel %vm67, %v65, 0
    %v90 = vsel %vm67, %v66, 0
    %92 = vmatprep.subr.mxu0 0.0
    %93 = vmatpush1.msra.mxu0 0.0
    %94 = vmatprep.subr.mxu0 0.0
    %95 = vmatpush1.msra.mxu0 0.0
    %96 = vmatprep.subr.mxu0 0.0
    %97 = vmatpush1.msra.mxu0 0.0
    %98 = vmatprep.subr.mxu0 0.0
    %99 = vmatpush1.msra.mxu0 0.0
    %100 = vmatprep.subr.mxu0 0.0
    %101 = vmatpush1.msra.mxu0 0.0
    %102 = vmatprep.subr.mxu0 0.0
    %103 = vmatpush1.msra.mxu0 0.0
    %104 = vmatprep.subr.mxu0 0.0
    %105 = vmatpush1.msra.mxu0 0.0
    %106 = vmatprep.subr.mxu0 0.0
    %107 = vmatpush1.msra.mxu0 0.0
    %108 = vmatprep.subr.mxu0 0.0
    %109 = vmatpush1.msra.mxu0 0.0
    %110 = vmatprep.subr.mxu0 0.0
    %111 = vmatpush1.msra.mxu0 0.0
    %112 = vmatprep.subr.mxu0 0.0
    %113 = vmatpush1.msra.mxu0 0.0
    %114 = vmatprep.subr.mxu0 0.0
    %115 = vmatpush1.msra.mxu0 0.0
    %116 = vmatprep.subr.mxu0 0.0
    %117 = vmatpush1.msra.mxu0 1.0
    %118 = vmatprep.subr.mxu0 0.0
    %119 = vmatpush1.msra.mxu0 1.0
    %120 = vmatprep.subr.mxu0 0.0
    %121 = vmatpush1.msra.mxu0 1.0
    %122 = vmatprep.subr.mxu0 0.0
    %123 = vmatpush1.msra.mxu0 1.0
    %124 = vmatprep.subr.mxu0 0.0
    %125 = vmatpush2.msra.mxu0 0.0
    %126 = vmatprep.subr.mxu0 0.0
    %127 = vmatpush2.msra.mxu0 0.0
    %128 = vmatprep.subr.mxu0 0.0
    %129 = vmatpush2.msra.mxu0 0.0
    %130 = vmatprep.subr.mxu0 0.0
    %131 = vmatpush2.msra.mxu0 0.0
    %132 = vmatprep.subr.mxu0 0.0
    %133 = vmatpush2.msra.mxu0 0.0
    %134 = vmatprep.subr.mxu0 0.0
    %135 = vmatpush2.msra.mxu0 0.0
    %136 = vmatprep.subr.mxu0 0.0
    %137 = vmatpush2.msra.mxu0 0.0
    %138 = vmatprep.subr.mxu0 0.0
    %139 = vmatpush2.msra.mxu0 0.0
    %140 = vmatprep.subr.mxu0 0.0
    %141 = vmatpush2.msra.mxu0 0.0
    %142 = vmatprep.subr.mxu0 0.0
    %143 = vmatpush2.msra.mxu0 0.0
    %144 = vmatprep.subr.mxu0 0.0
    %145 = vmatpush2.msra.mxu0 0.0
    %146 = vmatprep.subr.mxu0 0.0
    %147 = vmatpush2.msra.mxu0 0.0
    %148 = vmatprep.subr.mxu0 0.0
    %149 = vmatpush2.msra.mxu0 0.0
    %150 = vmatprep.subr.mxu0 0.0
    %151 = vmatpush2.msra.mxu0 0.0
    %152 = vmatprep.subr.mxu0 0.0
    %153 = vmatpush2.msra.mxu0 0.0
    %154 = vmatprep.subr.mxu0 0.0
    %155 = vmatpush2.msra.mxu0 0.0
    %156 = vmatprep.mubr.f32.mxu0 0.0
    %157 = vmatmul.mubr.f32.gmra.mxu0 %v69
    %v158 = vpop.f32.mrf.mxu0
    %v159 = vadd.f32 0.0, %v158
    %v160 = vpop.f32.mrf.mxu0
    %161 = vmatprep.mubr.f32.mxu0 0.0
    %162 = vmatmul.mubr.f32.gmra.mxu0 %v72
    %v163 = vpop.f32.mrf.mxu0
    %v164 = vadd.f32 0.0, %v163
    %v165 = vpop.f32.mrf.mxu0
    %166 = vmatprep.mubr.f32.mxu0 0.0
    %167 = vmatmul.mubr.f32.gmra.mxu0 %v75
    %v168 = vpop.f32.mrf.mxu0
    %v169 = vadd.f32 0.0, %v168
    %v170 = vpop.f32.mrf.mxu0
    %171 = vmatprep.mubr.f32.mxu0 0.0
    %172 = vmatmul.mubr.f32.gmra.mxu0 %v78
    %v173 = vpop.f32.mrf.mxu0
    %v174 = vadd.f32 0.0, %v173
    %v175 = vpop.f32.mrf.mxu0
    %176 = vmatprep.mubr.f32.mxu0 0.0
    %177 = vmatmul.mubr.f32.gmra.mxu0 %v81
    %v178 = vpop.f32.mrf.mxu0
    %v179 = vadd.f32 0.0, %v178
    %v180 = vpop.f32.mrf.mxu0
    %181 = vmatprep.mubr.f32.mxu0 0.0
    %182 = vmatmul.mubr.f32.gmra.mxu0 %v84
    %v183 = vpop.f32.mrf.mxu0
    %v184 = vadd.f32 0.0, %v183
    %v185 = vpop.f32.mrf.mxu0
    %186 = vmatprep.mubr.f32.mxu0 0.0
    %187 = vmatmul.mubr.f32.gmra.mxu0 %v87
    %v188 = vpop.f32.mrf.mxu0
    %v189 = vadd.f32 0.0, %v188
    %v190 = vpop.f32.mrf.mxu0
    %191 = vmatprep.mubr.f32.mxu0 0.0
    %192 = vmatmul.mubr.f32.gmra.mxu0 %v90
    %v193 = vpop.f32.mrf.mxu0
    %v194 = vadd.f32 0.0, %v193
    %v195 = vpop.f32.mrf.mxu0
    %196 = vdwg.mxu0
    %v197 = vld [vmem:[%s0] sm:$0xff]
    %198 = vset.pattern.permute.xlu0 0
    %199 = vperm.xlu0 %198, %v197
    %v200 = vpop.permute.xlu0 %199
    %vm201 = vcmp.le.s32.totalorder %v200, 0
    %vm202 = vcmp.le.s32.totalorder %v200, 1
    %vm203 = vcmp.le.s32.totalorder %v200, 2
    %vm204 = vcmp.le.s32.totalorder %v200, 3
    %vm205 = vcmp.le.s32.totalorder %v200, 4
    %vm206 = vcmp.le.s32.totalorder %v200, 5
    %vm207 = vcmp.le.s32.totalorder %v200, 6
    %vm208 = vcmp.le.s32.totalorder %v200, 7
    %v209 = vsel %vm201, -1e+09, %v159
    %v210 = vsel %vm202, -1e+09, %v164
    %v211 = vsel %vm203, -1e+09, %v169
    %v212 = vsel %vm204, -1e+09, %v174
    %v213 = vsel %vm205, -1e+09, %v179
    %v214 = vsel %vm206, -1e+09, %v184
    %v215 = vsel %vm207, -1e+09, %v189
    %v216 = vsel %vm208, -1e+09, %v194
    %vm217 = vcmask 130048
    %v218 = vsel %vm217, %v209, -inf
    %v219 = vsel %vm217, %v210, -inf
    %v220 = vsel %vm217, %v211, -inf
    %v221 = vsel %vm217, %v212, -inf
    %v222 = vsel %vm217, %v213, -inf
    %v223 = vmax.f32 %v218, %v222
    %v224 = vsel %vm217, %v214, -inf
    %v225 = vmax.f32 %v219, %v224
    %v226 = vsel %vm217, %v215, -inf
    %v227 = vmax.f32 %v220, %v226
    %v228 = vsel %vm217, %v216, -inf
    %v229 = vmax.f32 %v221, %v228
    %v230 = vmax.f32 %v223, %v225
    %v231 = vmax.f32 %v227, %v229
    %v232 = vmax.f32 %v230, %v231
    %v233 = vsub.f32 %v209, %v232
    %v234 = vsub.f32 %v210, %v232
    %v235 = vsub.f32 %v211, %v232
    %v236 = vsub.f32 %v212, %v232
    %v237 = vsub.f32 %v213, %v232
    %v238 = vsub.f32 %v214, %v232
    %v239 = vsub.f32 %v215, %v232
    %v240 = vsub.f32 %v216, %v232
    %v241 = vmul.f32 %v233, 1.442695
    %v242 = vpow.pop %v241
    %v243 = vmul.f32 %v234, 1.442695
    %v244 = vpow.pop %v243
    %v245 = vmul.f32 %v235, 1.442695
    %v246 = vpow.pop %v245
    %v247 = vmul.f32 %v236, 1.442695
    %v248 = vpow.pop %v247
    %v249 = vmul.f32 %v237, 1.442695
    %v250 = vpow.pop %v249
    %v251 = vmul.f32 %v238, 1.442695
    %v252 = vpow.pop %v251
    %v253 = vmul.f32 %v239, 1.442695
    %v254 = vpow.pop %v253
    %v255 = vmul.f32 %v240, 1.442695
    %v256 = vpow.pop %v255
    %v257 = vsel %vm217, %v242, 0.0
    %v258 = vsel %vm217, %v244, 0.0
    %v259 = vadd.f32 %v257, %v258
    %v260 = vsel %vm217, %v246, 0.0
    %v261 = vadd.f32 %v259, %v260
    %v262 = vsel %vm217, %v248, 0.0
    %v263 = vadd.f32 %v261, %v262
    %v264 = vsel %vm217, %v250, 0.0
    %v265 = vadd.f32 %v263, %v264
    %v266 = vsel %vm217, %v252, 0.0
    %v267 = vadd.f32 %v265, %v266
    %v268 = vsel %vm217, %v254, 0.0
    %v269 = vadd.f32 %v267, %v268
    %v270 = vsel %vm217, %v256, 0.0
    %v271 = vadd.f32 %v269, %v270
    %v272 = vrcp.pop %v271
    %v273 = vmul.f32 %v271, %v272
    %v274 = vsub.f32 2.0, %v273
    %v275 = vmul.f32 %v272, %v274
    %v276 = vmul.f32 %v242, %v275
    %v277 = vmul.f32 %v244, %v275
    %v278 = vmul.f32 %v246, %v275
    %v279 = vmul.f32 %v248, %v275
    %v280 = vmul.f32 %v250, %v275
    %v281 = vmul.f32 %v252, %v275
    %v282 = vmul.f32 %v254, %v275
    %v283 = vmul.f32 %v256, %v275
    %v284 = vld [vmem:[#allocation5] sm:$0xff]
    %v285 = vld [vmem:[#allocation5 + $0x8] sm:$0xff]
    %v286 = vld [vmem:[#allocation5 + $0x10] sm:$0xff]
    %v287 = vld [vmem:[#allocation5 + $0x18] sm:$0xff]
    %v288 = vld [vmem:[#allocation5 + $0x20] sm:$0xff]
    %v289 = vld [vmem:[#allocation5 + $0x28] sm:$0xff]
    %v290 = vld [vmem:[#allocation5 + $0x30] sm:$0xff]
    %v291 = vld [vmem:[#allocation5 + $0x38] sm:$0xff]
    %v292 = vmul.f32 %v276, %v284
    %v293 = vmul.f32 %v277, %v285
    %v294 = vmul.f32 %v278, %v286
    %v295 = vmul.f32 %v279, %v287
    %v296 = vmul.f32 %v280, %v288
    %v297 = vmul.f32 %v281, %v289
    %v298 = vmul.f32 %v282, %v290
    %v299 = vmul.f32 %v283, %v291
    %v300 = vsel %vm217, %v292, 0.0
    %v301 = vsel %vm217, %v293, 0.0
    %v302 = vadd.f32 %v300, %v301
    %v303 = vsel %vm217, %v294, 0.0
    %v304 = vadd.f32 %v302, %v303
    %v305 = vsel %vm217, %v295, 0.0
    %v306 = vadd.f32 %v304, %v305
    %v307 = vsel %vm217, %v296, 0.0
    %v308 = vadd.f32 %v306, %v307
    %v309 = vsel %vm217, %v297, 0.0
    %v310 = vadd.f32 %v308, %v309
    %v311 = vsel %vm217, %v298, 0.0
    %v312 = vadd.f32 %v310, %v311
    %v313 = vsel %vm217, %v299, 0.0
    %v314 = vadd.f32 %v312, %v313
    %315 = vst.msk [vmem:[#allocation7] sm:$0xff] %vm217, %v314
    %v316 = vsel %vm217, %v276, -inf
    %317 = vmax.xlane.f32.xlu0 %v316
    %v318 = vpop.xlane.xlu0 %317
    %v319 = vsel %vm217, %v277, -inf
    %320 = vmax.xlane.f32.xlu0 %v319
    %v321 = vpop.xlane.xlu0 %320
    %v322 = vsel %vm217, %v278, -inf
    %323 = vmax.xlane.f32.xlu0 %v322
    %v324 = vpop.xlane.xlu0 %323
    %v325 = vsel %vm217, %v279, -inf
    %326 = vmax.xlane.f32.xlu0 %v325
    %v327 = vpop.xlane.xlu0 %326
    %v328 = vsel %vm217, %v280, -inf
    %329 = vmax.xlane.f32.xlu0 %v328
    %v330 = vpop.xlane.xlu0 %329
    %v331 = vsel %vm217, %v281, -inf
    %332 = vmax.xlane.f32.xlu0 %v331
    %v333 = vpop.xlane.xlu0 %332
    %v334 = vsel %vm217, %v282, -inf
    %335 = vmax.xlane.f32.xlu0 %v334
    %v336 = vpop.xlane.xlu0 %335
    %v337 = vsel %vm217, %v283, -inf
    %338 = vmax.xlane.f32.xlu0 %v337
    %v339 = vpop.xlane.xlu0 %338
    %v340 = vlaneseq
    %v341 = vshrl.u32 %v340, 7
    %v342 = vlaneseq
    %v343 = vand.u32 %v342, 127
    %vm344 = vcmp.eq.s32.totalorder %v341, %v343
    %v345 = vsel %vm344, 1, 0
    %v346 = vcvt.s32.f32 %v345
    %v355 = vlaneseq
    %v356 = vshrl.u32 %v355, 7
    %v357 = vsub.s32 %v343, %v356
    %v358 = vrot.slane %v318, %v357
    %v359 = vlaneseq
    %v360 = vshrl.u32 %v359, 7
    %v361 = vsub.s32 %v343, %v360
    %v362 = vrot.slane %v321, %v361
    %v363 = vlaneseq
    %v364 = vshrl.u32 %v363, 7
    %v365 = vsub.s32 %v343, %v364
    %v366 = vrot.slane %v324, %v365
    %v367 = vlaneseq
    %v368 = vshrl.u32 %v367, 7
    %v369 = vsub.s32 %v343, %v368
    %v370 = vrot.slane %v327, %v369
    %v371 = vlaneseq
    %v372 = vshrl.u32 %v371, 7
    %v373 = vsub.s32 %v343, %v372
    %v374 = vrot.slane %v330, %v373
    %v375 = vlaneseq
    %v376 = vshrl.u32 %v375, 7
    %v377 = vsub.s32 %v343, %v376
    %v378 = vrot.slane %v333, %v377
    %v379 = vlaneseq
    %v380 = vshrl.u32 %v379, 7
    %v381 = vsub.s32 %v343, %v380
    %v382 = vrot.slane %v336, %v381
    %v383 = vlaneseq
    %v384 = vshrl.u32 %v383, 7
    %v385 = vsub.s32 %v343, %v384
    %v386 = vrot.slane %v339, %v385
    %vm387 = vcmask 1041409
    %v388 = vsel %vm387, %v362, %v358
    %vm389 = vcmask 1042434
    %v390 = vsel %vm389, %v366, %v388
    %vm391 = vcmask 1043459
    %v392 = vsel %vm391, %v370, %v390
    %vm393 = vcmask 1044484
    %v394 = vsel %vm393, %v374, %v392
    %vm395 = vcmask 1045509
    %v396 = vsel %vm395, %v378, %v394
    %vm397 = vcmask 1046534
    %v398 = vsel %vm397, %v382, %v396
    %vm399 = vcmask 1047559
    %v400 = vsel %vm399, %v386, %v398
    %vm401 = vcmask 64512
    %v403 = vsel %vm401, %v346, 0
    %v405 = vsel %vm401, %v400, 0
    %407 = vmatprep.subr.mxu0 0.0
    %408 = vmatpush1.xpose.msra.mxu0 0.0
    %409 = vmatprep.subr.mxu0 0.0
    %410 = vmatpush1.xpose.msra.mxu0 0.0
    %411 = vmatprep.subr.mxu0 0.0
    %412 = vmatpush1.xpose.msra.mxu0 0.0
    %413 = vmatprep.subr.mxu0 0.0
    %414 = vmatpush1.xpose.msra.mxu0 0.0
    %415 = vmatprep.subr.mxu0 0.0
    %416 = vmatpush1.xpose.msra.mxu0 0.0
    %417 = vmatprep.subr.mxu0 0.0
    %418 = vmatpush1.xpose.msra.mxu0 0.0
    %419 = vmatprep.subr.mxu0 0.0
    %420 = vmatpush1.xpose.msra.mxu0 0.0
    %421 = vmatprep.subr.mxu0 0.0
    %422 = vmatpush1.xpose.msra.mxu0 0.0
    %423 = vmatprep.subr.mxu0 0.0
    %424 = vmatpush1.xpose.msra.mxu0 0.0
    %425 = vmatprep.subr.mxu0 0.0
    %426 = vmatpush1.xpose.msra.mxu0 0.0
    %427 = vmatprep.subr.mxu0 0.0
    %428 = vmatpush1.xpose.msra.mxu0 0.0
    %429 = vmatprep.subr.mxu0 0.0
    %430 = vmatpush1.xpose.msra.mxu0 0.0
    %431 = vmatprep.subr.mxu0 0.0
    %432 = vmatpush1.xpose.msra.mxu0 0.0
    %433 = vmatprep.subr.mxu0 0.0
    %434 = vmatpush1.xpose.msra.mxu0 0.0
    %435 = vmatprep.subr.mxu0 0.0
    %436 = vmatpush1.xpose.msra.mxu0 0.0
    %437 = vmatprep.subr.mxu0 0.0
    %438 = vmatpush1.xpose.msra.mxu0 %v405
    %439 = vmatprep.subr.mxu0 0.0
    %440 = vmatpush2.xpose.msra.mxu0 0.0
    %441 = vmatprep.subr.mxu0 0.0
    %442 = vmatpush2.xpose.msra.mxu0 0.0
    %443 = vmatprep.subr.mxu0 0.0
    %444 = vmatpush2.xpose.msra.mxu0 0.0
    %445 = vmatprep.subr.mxu0 0.0
    %446 = vmatpush2.xpose.msra.mxu0 0.0
    %447 = vmatprep.subr.mxu0 0.0
    %448 = vmatpush2.xpose.msra.mxu0 0.0
    %449 = vmatprep.subr.mxu0 0.0
    %450 = vmatpush2.xpose.msra.mxu0 0.0
    %451 = vmatprep.subr.mxu0 0.0
    %452 = vmatpush2.xpose.msra.mxu0 0.0
    %453 = vmatprep.subr.mxu0 0.0
    %454 = vmatpush2.xpose.msra.mxu0 0.0
    %455 = vmatprep.subr.mxu0 0.0
    %456 = vmatpush2.xpose.msra.mxu0 0.0
    %457 = vmatprep.subr.mxu0 0.0
    %458 = vmatpush2.xpose.msra.mxu0 0.0
    %459 = vmatprep.subr.mxu0 0.0
    %460 = vmatpush2.xpose.msra.mxu0 0.0
    %461 = vmatprep.subr.mxu0 0.0
    %462 = vmatpush2.xpose.msra.mxu0 0.0
    %463 = vmatprep.subr.mxu0 0.0
    %464 = vmatpush2.xpose.msra.mxu0 0.0
    %465 = vmatprep.subr.mxu0 0.0
    %466 = vmatpush2.xpose.msra.mxu0 0.0
    %467 = vmatprep.subr.mxu0 0.0
    %468 = vmatpush2.xpose.msra.mxu0 0.0
    %469 = vmatprep.subr.mxu0 0.0
    %470 = vmatpush2.xpose.msra.mxu0 0.0
    %471 = vmatprep.mubr.f32.mxu0 0.0
    %472 = vmatmul.mubr.f32.gmra.mxu0 %v403
    %v473 = vpop.f32.mrf.mxu0
    %v474 = vadd.f32 0.0, %v473
    %v475 = vpop.f32.mrf.mxu0
    %476 = vdwg.mxu0
    %477 = vst.msk [vmem:[#allocation8] sm:$0xff] %vm401, %v474
    // Predicated region
    $region26: #{tpu_custom_call.1} parent=1 // pred_check
      _
    $region27: #{tpu_custom_call.1} parent=1 // pred_check_branch
      %479 = sbr.rel (0) target = $region29
    $region28: #{tpu_custom_call.1} parent=1 // pred_region
      %s481 = ssub.s32 128, 128
      %482 = vsyncadd [#allocation4], %s481
      %s484 = sshll.u32 [#allocation7], 4
      %s485 = int_to_ptr.vmem [resolvable:$true] %s484
      %487 = dma.vmem_to_hbm [thread:$0]  %s485, 128, %s4, [#allocation4]
    $region29: #{tpu_custom_call.1} parent=1 // pred_fallthru
      _
    // Predicated region
    $region30: #{tpu_custom_call.1} parent=1 // pred_check
      _
    $region31: #{tpu_custom_call.1} parent=1 // pred_check_branch
      %489 = sbr.rel (0) target = $region33
    $region32: #{tpu_custom_call.1} parent=1 // pred_region
      %s491 = ssub.s32 128, 128
      %492 = vsyncadd [#allocation9], %s491
      %s494 = sshll.u32 [#allocation8], 4
      %s495 = int_to_ptr.vmem [resolvable:$true] %s494
      %497 = dma.vmem_to_hbm [thread:$0]  %s495, 128, %s5, [#allocation9]
    $region33: #{tpu_custom_call.1} parent=1 // pred_fallthru
      _
    // Predicated region
    $region34: #{tpu_custom_call.1} parent=1 // pred_check
      _
    $region35: #{tpu_custom_call.1} parent=1 // pred_check_branch
      %499 = sbr.rel (0) target = $region37
    $region36: #{tpu_custom_call.1} parent=1 // pred_region
      %500 = dma.done [#allocation4], 128
    $region37: #{tpu_custom_call.1} parent=1 // pred_fallthru
      _
    // Predicated region
    $region38: #{tpu_custom_call.1} parent=1 // pred_check
      _
    $region39: #{tpu_custom_call.1} parent=1 // pred_check_branch
      %502 = sbr.rel (0) target = $region41
    $region40: #{tpu_custom_call.1} parent=1 // pred_region
      %503 = dma.done [#allocation9], 128
    $region41: #{tpu_custom_call.1} parent=1 // pred_fallthru
      _
    %504 = vsyncpa [#allocation3], 1
    %505 = vsyncpa [#allocation6], 1
    %506 = vsyncpa [#allocation4], 1
    %507 = vsyncpa [#allocation9], 1

</llo_original>
